<compile_context>
chip_gen: v5e
topology: v5e:2x2
jax: 0.10.0
libtpu: 0.0.40
codegen_flags: <defaults>
</compile_context>

<pallas_src>
import functools
import math

import jax
import jax.numpy as jnp
from jax import lax
from jax.experimental import pallas as pl
from jax.experimental.pallas import tpu as pltpu

_VMEM_LIMIT = 32 * 1024 * 1024  # safe on v5e/v6e (128 MiB VMEM) and v7x (64 MiB VMEM)


def _pick_tile(n, pref):
    """Largest tile <= pref that evenly divides n (avoids padded edge blocks)."""
    if n <= pref:
        return n
    for t in (1024, 512, 384, 256, 128, 64, 32, 16, 8):
        if t <= pref and n % t == 0:
            return t
    return n


# ------------------------------ linear (tiled) ------------------------------ #

def _linear_kernel(x_ref, w_ref, b_ref, o_ref):
    acc = jnp.dot(x_ref[...], w_ref[...], preferred_element_type=jnp.float32)
    o_ref[...] = (acc + b_ref[...]).astype(o_ref.dtype)


def pallas_linear(x2d, w, b, *, out_dtype=jnp.float32, tm=256):
    """x2d: (M, Din), w: (Din, Dout), b: (Dout,) f32 -> (M, Dout) in out_dtype."""
    M, Din = x2d.shape
    Dout = w.shape[1]
    TM = _pick_tile(M, tm)
    cost = pl.CostEstimate(
        flops=2 * M * Din * Dout,
        transcendentals=0,
        bytes_accessed=(M * Din + Din * Dout) * x2d.dtype.itemsize
        + Dout * 4
        + M * Dout * jnp.dtype(out_dtype).itemsize,
    )
    return pl.pallas_call(
        _linear_kernel,
        out_shape=jax.ShapeDtypeStruct((M, Dout), out_dtype),
        grid=(M // TM,),
        in_specs=[
            pl.BlockSpec((TM, Din), lambda i: (i, 0)),
            pl.BlockSpec((Din, Dout), lambda i: (0, 0)),  # weight stays VMEM-resident
            pl.BlockSpec((1, Dout), lambda i: (0, 0)),
        ],
        out_specs=pl.BlockSpec((TM, Dout), lambda i: (i, 0)),
        compiler_params=pltpu.CompilerParams(
            dimension_semantics=("parallel",),
            vmem_limit_bytes=_VMEM_LIMIT,
        ),
        cost_estimate=cost,
    )(x2d, w, b.reshape(1, Dout))


# ---------------- dual K/V projection -> one concatenated KV slab ------------ #

def _kv_linear_kernel(xk_ref, xv_ref, wk_ref, wv_ref, bk_ref, bv_ref, o_ref):
    kp = jnp.dot(xk_ref[...], wk_ref[...], preferred_element_type=jnp.float32) + bk_ref[...]
    vp = jnp.dot(xv_ref[...], wv_ref[...], preferred_element_type=jnp.float32) + bv_ref[...]
    # single lane-dense store of the concatenated [K_ | V_] slab
    o_ref[...] = jnp.concatenate([kp, vp], axis=-1).astype(o_ref.dtype)


def pallas_kv_linear(xk, xv, wk, wv, bk, bv, *, out_dtype, tm=256):
    """Distinct K/V inputs -> (M, Dk+Dv) concatenated KV slab (no HBM-side concat)."""
    M, Din = xk.shape
    Dk = wk.shape[1]
    Dv = wv.shape[1]
    TM = _pick_tile(M, tm)
    cost = pl.CostEstimate(
        flops=2 * M * Din * (Dk + Dv),
        transcendentals=0,
        bytes_accessed=(2 * M * Din + Din * (Dk + Dv)) * xk.dtype.itemsize
        + (Dk + Dv) * 4
        + M * (Dk + Dv) * jnp.dtype(out_dtype).itemsize,
    )
    return pl.pallas_call(
        _kv_linear_kernel,
        out_shape=jax.ShapeDtypeStruct((M, Dk + Dv), out_dtype),
        grid=(M // TM,),
        in_specs=[
            pl.BlockSpec((TM, Din), lambda i: (i, 0)),
            pl.BlockSpec((TM, Din), lambda i: (i, 0)),
            pl.BlockSpec((Din, Dk), lambda i: (0, 0)),
            pl.BlockSpec((Din, Dv), lambda i: (0, 0)),
            pl.BlockSpec((1, Dk), lambda i: (0, 0)),
            pl.BlockSpec((1, Dv), lambda i: (0, 0)),
        ],
        out_specs=pl.BlockSpec((TM, Dk + Dv), lambda i: (i, 0)),
        compiler_params=pltpu.CompilerParams(
            dimension_semantics=("parallel",),
            vmem_limit_bytes=_VMEM_LIMIT,
        ),
        cost_estimate=cost,
    )(xk, xv, wk, wv, bk.reshape(1, Dk), bv.reshape(1, Dv))


# --------- fused (Q-proj + flash attention + output-proj) kernel ------------- #

def _fused_attn_kernel(q_ref, kv_ref, wq_ref, bq_ref, wo_ref, bo_ref, o_ref,
                       qp_sc, m_sc, l_sc, acc_sc, *, h, dk, dv, scale):
    ki = pl.program_id(2)

    @pl.when(ki == 0)
    def _():
        # Project the raw Q tile once per (batch, q-tile): (TQ, dm) @ (dm, h*dk) + bq.
        qp = jnp.dot(q_ref[...], wq_ref[...], preferred_element_type=jnp.float32)
        qp_sc[...] = (qp + bq_ref[...]).astype(qp_sc.dtype)
        m_sc[...] = jnp.full(m_sc.shape, -jnp.inf, m_sc.dtype)
        l_sc[...] = jnp.zeros(l_sc.shape, l_sc.dtype)
        acc_sc[...] = jnp.zeros(acc_sc.shape, acc_sc.dtype)

    qp = qp_sc[...]          # (TQ, h*dk) in compute dtype
    kv = kv_ref[...]         # (TK, h*dk + h*dv)
    k_all = kv[:, :h * dk]
    v_all = kv[:, h * dk:]

    for hd in range(h):
        q_h = qp[:, hd * dk:(hd + 1) * dk]
        k_h = k_all[:, hd * dk:(hd + 1) * dk]
        v_h = v_all[:, hd * dv:(hd + 1) * dv]
        # Scores: contract last axis of both operands (trans-B, no K transpose / XLU work).
        s = lax.dot_general(q_h, k_h, (((1,), (1,)), ((), ())),
                            preferred_element_type=jnp.float32) * scale     # (TQ, TK) f32
        m_prev = m_sc[:, hd:hd + 1]                                          # (TQ, 1)
        m_new = jnp.maximum(m_prev, jnp.max(s, axis=-1, keepdims=True))
        alpha = jnp.exp(m_prev - m_new)
        p = jnp.exp(s - m_new)                                               # (TQ, TK) f32
        l_sc[:, hd:hd + 1] = alpha * l_sc[:, hd:hd + 1] + jnp.sum(p, axis=-1, keepdims=True)
        acc_sc[:, hd * dv:(hd + 1) * dv] = (
            alpha * acc_sc[:, hd * dv:(hd + 1) * dv]
            + jnp.dot(p.astype(v_h.dtype), v_h, preferred_element_type=jnp.float32))
        m_sc[:, hd:hd + 1] = m_new

    @pl.when(ki == pl.num_programs(2) - 1)
    def _():
        # Normalize the small (TQ, h*dv) accumulator (recip on EUP), then apply the
        # output projection in-kernel and write a single lane-dense (TQ, dim_model) tile.
        inv_l = pl.reciprocal(l_sc[...], approx=True)   # (TQ, h)
        for hd in range(h):
            acc_sc[:, hd * dv:(hd + 1) * dv] = (
                acc_sc[:, hd * dv:(hd + 1) * dv] * inv_l[:, hd:hd + 1])
        ctx = acc_sc[...].astype(wo_ref.dtype)          # (TQ, h*dv)
        out = jnp.dot(ctx, wo_ref[...], preferred_element_type=jnp.float32) + bo_ref[...]
        o_ref[...] = out.astype(o_ref.dtype)


def pallas_fused_attention(Qraw, KVp, Wq, bq, Wo, bo, *, h, dk, dv, scale,
                           out_dtype, compute_dtype, tq=256, tk=256):
    """Qraw: (B,Sq,dm) unprojected, KVp: (B,Sk,h*dk+h*dv) -> (B,Sq,dm) projected output."""
    B, Sq, dm = Qraw.shape
    Sk = KVp.shape[1]
    dkv = h * dk + h * dv
    TQ = _pick_tile(Sq, tq)
    TK = _pick_tile(Sk, tk)
    kernel = functools.partial(_fused_attn_kernel, h=h, dk=dk, dv=dv, scale=scale)
    cost = pl.CostEstimate(
        flops=(2 * B * Sq * dm * h * dk              # fused Q projection
               + 2 * B * h * Sq * Sk * (dk + dv)     # scores + PV
               + 2 * B * Sq * h * dv * dm),          # fused output projection
        transcendentals=B * h * Sq * Sk,
        bytes_accessed=(Qraw.size * Qraw.dtype.itemsize
                        + KVp.size * KVp.dtype.itemsize
                        + Wq.size * Wq.dtype.itemsize
                        + Wo.size * Wo.dtype.itemsize
                        + B * Sq * dm * jnp.dtype(out_dtype).itemsize),
    )
    return pl.pallas_call(
        kernel,
        out_shape=jax.ShapeDtypeStruct((B, Sq, dm), out_dtype),
        grid_spec=pltpu.PrefetchScalarGridSpec(
            num_scalar_prefetch=0,
            grid=(B, Sq // TQ, Sk // TK),
            in_specs=[
                pl.BlockSpec((None, TQ, dm), lambda b, qi, ki: (b, qi, 0)),   # raw Q tile
                pl.BlockSpec((None, TK, dkv), lambda b, qi, ki: (b, ki, 0)),  # KV slab tile
                pl.BlockSpec((dm, h * dk), lambda b, qi, ki: (0, 0)),         # Wq (resident)
                pl.BlockSpec((1, h * dk), lambda b, qi, ki: (0, 0)),          # bq
                pl.BlockSpec((h * dv, dm), lambda b, qi, ki: (0, 0)),         # Wo (resident)
                pl.BlockSpec((1, dm), lambda b, qi, ki: (0, 0)),              # bo
            ],
            out_specs=pl.BlockSpec((None, TQ, dm), lambda b, qi, ki: (b, qi, 0)),
            scratch_shapes=[
                pltpu.VMEM((TQ, h * dk), compute_dtype),   # projected Q tile
                pltpu.VMEM((TQ, h), jnp.float32),          # running max per head
                pltpu.VMEM((TQ, h), jnp.float32),          # running sum per head
                pltpu.VMEM((TQ, h * dv), jnp.float32),     # output accumulator
            ],
        ),
        compiler_params=pltpu.CompilerParams(
            dimension_semantics=("parallel", "parallel", "arbitrary"),
            vmem_limit_bytes=_VMEM_LIMIT,
        ),
        cost_estimate=cost,
    )(Qraw, KVp, Wq, bq.reshape(1, h * dk), Wo, bo.reshape(1, dm))


# --------------------------- module-level wrapper --------------------------- #

class MultiHeadedAttentionLayerPallas:
    def __init__(self, dim_model, dim_k, dim_v, h, key, compute_dtype=jnp.float32):
        self.dim_model, self.dim_k, self.dim_v, self.h = dim_model, dim_k, dim_v, h
        self.compute_dtype = compute_dtype

        def init_linear(k, fan_in, fan_out):
            # mimic torch.nn.Linear default: U(-1/sqrt(fan_in), 1/sqrt(fan_in))
            kw, kb = jax.random.split(k)
            bound = 1.0 / math.sqrt(fan_in)
            W = jax.random.uniform(kw, (fan_in, fan_out), jnp.float32, -bound, bound)
            b = jax.random.uniform(kb, (fan_out,), jnp.float32, -bound, bound)
            return W, b

        kq, kk, kv, ko = jax.random.split(key, 4)
        self.Wq, self.bq = init_linear(kq, dim_model, dim_k * h)
        self.Wk, self.bk = init_linear(kk, dim_model, dim_k * h)
        self.Wv, self.bv = init_linear(kv, dim_model, dim_v * h)
        self.Wo, self.bo = init_linear(ko, h * dim_v, dim_model)

        cd = compute_dtype
        self.Wq_c = self.Wq.astype(cd)
        self.Wk_c = self.Wk.astype(cd)
        self.Wv_c = self.Wv.astype(cd)
        self.Wo_c = self.Wo.astype(cd)
        # Fused K+V weights for the shared-KV fast path (K is V): one matmul, input read once.
        self.Wkv_c = jnp.concatenate([self.Wk_c, self.Wv_c], axis=1)
        self.bkv = jnp.concatenate([self.bk, self.bv])

    def __call__(self, Q, K, V, mask=None):
        # TODO(synk): mask path (masked_fill -inf before the online-softmax max) not wired.
        assert mask is None
        b, len_q, dm = Q.shape
        len_k = K.shape[1]
        h, dk, dv = self.h, self.dim_k, self.dim_v
        cd = self.compute_dtype

        # K/V projections produce a single concatenated KV slab (B, Sk, h*dk + h*dv).
        if K is V:
            kv = pallas_linear(K.astype(cd).reshape(b * len_k, dm),
                               self.Wkv_c, self.bkv, out_dtype=cd)
        else:
            kv = pallas_kv_linear(K.astype(cd).reshape(b * len_k, dm),
                                  V.astype(cd).reshape(b * len_k, dm),
                                  self.Wk_c, self.Wv_c, self.bk, self.bv, out_dtype=cd)
        KVp = kv.reshape(b, len_k, h * dk + h * dv)

        # reproduce the original code's quirk: d_k = K_.shape[0] == batch size
        scale = 1.0 / math.sqrt(b)

        # Q projection, flash attention, and output projection all fused in one kernel.
        out = pallas_fused_attention(Q.astype(cd), KVp, self.Wq_c, self.bq,
                                     self.Wo_c, self.bo, h=h, dk=dk, dv=dv,
                                     scale=scale, out_dtype=jnp.float32,
                                     compute_dtype=cd)
        return out  # (b, len_q, dim_model)


# ------------------------------- pure-JAX ref ------------------------------- #

def reference_forward(layer, Q, K, V):
    b, len_q, _ = Q.shape
    h, dk, dv = layer.h, layer.dim_k, layer.dim_v
    Q_ = (Q @ layer.Wq + layer.bq).reshape(b, -1, h, dk).transpose(0, 2, 1, 3)
    K_ = (K @ layer.Wk + layer.bk).reshape(b, -1, h, dk).transpose(0, 2, 1, 3)
    V_ = (V @ layer.Wv + layer.bv).reshape(b, -1, h, dv).transpose(0, 2, 1, 3)
    att = jnp.einsum("bhqd,bhkd->bhqk", Q_ / math.sqrt(b), K_)
    att = jax.nn.softmax(att, axis=-1)
    out = jnp.einsum("bhqk,bhkd->bhqd", att, V_)
    out = out.transpose(0, 2, 1, 3).reshape(b, len_q, h * dv)
    return out @ layer.Wo + layer.bo


# ---------------------------------- main ------------------------------------ #

if __name__ == "__main__":
    dim_model, dim_k, dim_v, h = 32, 16, 16, 4
    b, seq = 2, 8

    root = jax.random.PRNGKey(0)
    k_params, kq, kk, kv = jax.random.split(root, 4)

    Q = jax.random.normal(kq, (b, seq, dim_model), jnp.float32)
    K = jax.random.normal(kk, (b, seq, dim_model), jnp.float32)
    V = jax.random.normal(kv, (b, seq, dim_model), jnp.float32)

    # f32 compute path, distinct Q/K/V (cross-attention style) -> dual KV projection kernel.
    layer = MultiHeadedAttentionLayerPallas(dim_model, dim_k, dim_v, h, k_params)
    out = jax.block_until_ready(layer(Q, K, V))
    ref = reference_forward(layer, Q, K, V)
    assert out.shape == (b, seq, dim_model)
    # tolerance slightly loosened vs exact f32 because of pl.reciprocal(approx=True)
    assert jnp.allclose(out, ref, atol=5e-3, rtol=5e-3), "f32 mismatch vs JAX reference"

    # bf16 MXU path, self-attention (exercises the shared fused-KV projection).
    layer_bf16 = MultiHeadedAttentionLayerPallas(dim_model, dim_k, dim_v, h, k_params,
                                                 compute_dtype=jnp.bfloat16)
    out_bf16 = jax.block_until_ready(layer_bf16(Q, Q, Q))
    ref_self = reference_forward(layer_bf16, Q, Q, Q)
    assert jnp.allclose(out_bf16.astype(jnp.float32), ref_self, atol=7e-2, rtol=7e-2), \
        "bf16 mismatch vs JAX reference"

    print("KERNEL_OK")
</pallas_src>

<mosaic_0001>
module attributes {stable_mosaic.version = 11 : i64} {
  func.func @_kv_linear_kernel(%arg0: i32, %arg1: memref<16x32xf32, #tpu.memory_space<vmem>>, %arg2: memref<16x32xf32, #tpu.memory_space<vmem>>, %arg3: memref<32x64xf32, #tpu.memory_space<vmem>>, %arg4: memref<32x64xf32, #tpu.memory_space<vmem>>, %arg5: memref<1x64xf32, #tpu.memory_space<vmem>>, %arg6: memref<1x64xf32, #tpu.memory_space<vmem>>, %arg7: memref<16x128xf32, #tpu.memory_space<vmem>>) attributes {dimension_semantics = [#tpu.dimension_semantics<parallel>], iteration_bounds = array<i64: 1>, scalar_prefetch = 0 : i64, scratch_operands = 0 : i64, tpu.core_type = #tpu.core_type<tc>, window_params = [{transform_indices = @transform_0, window_bounds = array<i64: 16, 32>}, {transform_indices = @transform_1, window_bounds = array<i64: 16, 32>}, {pipeline_mode = #tpu.pipeline_mode<synchronous>, transform_indices = @transform_2, window_bounds = array<i64: 32, 64>}, {pipeline_mode = #tpu.pipeline_mode<synchronous>, transform_indices = @transform_3, window_bounds = array<i64: 32, 64>}, {pipeline_mode = #tpu.pipeline_mode<synchronous>, transform_indices = @transform_4, window_bounds = array<i64: 1, 64>}, {pipeline_mode = #tpu.pipeline_mode<synchronous>, transform_indices = @transform_5, window_bounds = array<i64: 1, 64>}, {transform_indices = @transform_6, window_bounds = array<i64: 16, 128>}]} {
    %c0 = arith.constant 0 : index
    %c0_0 = arith.constant 0 : index
    %0 = vector.load %arg1[%c0, %c0_0] : memref<16x32xf32, #tpu.memory_space<vmem>>, vector<16x32xf32>
    %c0_1 = arith.constant 0 : index
    %c0_2 = arith.constant 0 : index
    %1 = vector.load %arg3[%c0_1, %c0_2] : memref<32x64xf32, #tpu.memory_space<vmem>>, vector<32x64xf32>
    %cst = arith.constant dense<0.000000e+00> : vector<16x64xf32>
    %2 = tpu.matmul %0, %1, %cst {dimension_numbers = #tpu.dot_dimension_numbers<[1], [0], [0], [1], [0, 0, 1, 1], [], []>} : vector<16x32xf32>, vector<32x64xf32>, vector<16x64xf32> -> vector<16x64xf32>
    %c0_3 = arith.constant 0 : index
    %c0_4 = arith.constant 0 : index
    %3 = vector.load %arg5[%c0_3, %c0_4] : memref<1x64xf32, #tpu.memory_space<vmem>>, vector<1x64xf32>
    %4 = vector.broadcast %3 : vector<1x64xf32> to vector<16x64xf32>
    %5 = arith.addf %2, %4 : vector<16x64xf32>
    %c0_5 = arith.constant 0 : index
    %c0_6 = arith.constant 0 : index
    %6 = vector.load %arg2[%c0_5, %c0_6] : memref<16x32xf32, #tpu.memory_space<vmem>>, vector<16x32xf32>
    %c0_7 = arith.constant 0 : index
    %c0_8 = arith.constant 0 : index
    %7 = vector.load %arg4[%c0_7, %c0_8] : memref<32x64xf32, #tpu.memory_space<vmem>>, vector<32x64xf32>
    %cst_9 = arith.constant dense<0.000000e+00> : vector<16x64xf32>
    %8 = tpu.matmul %6, %7, %cst_9 {dimension_numbers = #tpu.dot_dimension_numbers<[1], [0], [0], [1], [0, 0, 1, 1], [], []>} : vector<16x32xf32>, vector<32x64xf32>, vector<16x64xf32> -> vector<16x64xf32>
    %c0_10 = arith.constant 0 : index
    %c0_11 = arith.constant 0 : index
    %9 = vector.load %arg6[%c0_10, %c0_11] : memref<1x64xf32, #tpu.memory_space<vmem>>, vector<1x64xf32>
    %10 = vector.broadcast %9 : vector<1x64xf32> to vector<16x64xf32>
    %11 = arith.addf %8, %10 : vector<16x64xf32>
    %12 = tpu.concatenate %5, %11 in 1 : vector<16x64xf32>, vector<16x64xf32> -> vector<16x128xf32>
    %c0_12 = arith.constant 0 : index
    %c0_13 = arith.constant 0 : index
    %13 = vector.load %arg7[%c0_12, %c0_13] : memref<16x128xf32, #tpu.memory_space<vmem>>, vector<16x128xf32>
    tpu.vector_store %arg7[%c0_12, %c0_13], %12 {strides = array<i32>} : memref<16x128xf32, #tpu.memory_space<vmem>>, vector<16x128xf32>,
    return
  }
  func.func @transform_0(%arg0: i32) -> (i32, i32) {
    %c0_i32 = arith.constant 0 : i32
    %c0_i32_0 = arith.constant 0 : i32
    return %arg0, %c0_i32 : i32, i32
  }
  func.func @transform_1(%arg0: i32) -> (i32, i32) {
    %c0_i32 = arith.constant 0 : i32
    %c0_i32_0 = arith.constant 0 : i32
    return %arg0, %c0_i32 : i32, i32
  }
  func.func @transform_2(%arg0: i32) -> (i32, i32) {
    %c0_i32 = arith.constant 0 : i32
    %c0_i32_0 = arith.constant 0 : i32
    %c0_i32_1 = arith.constant 0 : i32
    return %c0_i32, %c0_i32_0 : i32, i32
  }
  func.func @transform_3(%arg0: i32) -> (i32, i32) {
    %c0_i32 = arith.constant 0 : i32
    %c0_i32_0 = arith.constant 0 : i32
    %c0_i32_1 = arith.constant 0 : i32
    return %c0_i32, %c0_i32_0 : i32, i32
  }
  func.func @transform_4(%arg0: i32) -> (i32, i32) {
    %c0_i32 = arith.constant 0 : i32
    %c0_i32_0 = arith.constant 0 : i32
    %c0_i32_1 = arith.constant 0 : i32
    return %c0_i32, %c0_i32_0 : i32, i32
  }
  func.func @transform_5(%arg0: i32) -> (i32, i32) {
    %c0_i32 = arith.constant 0 : i32
    %c0_i32_0 = arith.constant 0 : i32
    %c0_i32_1 = arith.constant 0 : i32
    return %c0_i32, %c0_i32_0 : i32, i32
  }
  func.func @transform_6(%arg0: i32) -> (i32, i32) {
    %c0_i32 = arith.constant 0 : i32
    %c0_i32_0 = arith.constant 0 : i32
    return %arg0, %c0_i32 : i32, i32
  }
}

</mosaic_0001>

<llo_original>
// kernel: tpu_custom_call.1
$region0: #{tpu_custom_call.1}
  #allocation0 [shape = 'u32[]', space=smem, size = 0x4, offset = 0x4, fixed_abs, tag = 'smem constant byte address 0x4 - core index']
  #allocation1 [shape = 'u32[72,128]{1,0:T(1,128)}', space=vmem, size = 0x9000, scoped, tag = 'internal scratch']
  %s0 = inlined_call_operand.hbm [shape: f32[16,32], index: 0, kind: input, shape index: {}]
  %s1 = inlined_call_operand.hbm [shape: f32[16,32], index: 1, kind: input, shape index: {}]
  %s2 = inlined_call_operand.hbm [shape: f32[32,64], index: 2, kind: input, shape index: {}]
  %s3 = inlined_call_operand.hbm [shape: f32[32,64], index: 3, kind: input, shape index: {}]
  %s4 = inlined_call_operand.vmem [shape: f32[1,64], index: 4, kind: input, shape index: {}]
  %s5 = inlined_call_operand.vmem [shape: f32[1,64], index: 5, kind: input, shape index: {}]
  %s6 = inlined_call_operand.hbm [shape: f32[16,128], index: 6, kind: output, shape index: {}]
  %s7 = sld [smem:[#allocation0]]
  $region50: #{tpu_custom_call.1} parent=0
    _
  %s9 = ssub.s32 1, %s7
  %s10 = scalar_select 0, %s9, %s7
  $region1: #{tpu_custom_call.1} parent=0
    #allocation2 [shape = 'u8[8192]{0}', space=vmem, size = 0x2000, scoped, tag = 'input window, operand 0, single buffered']
    #allocation3 [shape = 's32[1]{0}', space=sflag, size = 0x4, scoped, tag = 'scoped memory for tpu_custom_call.1']
    #allocation4 [shape = 's32[1]{0}', space=sflag, size = 0x4, scoped, tag = 'scoped memory for tpu_custom_call.1']
    #allocation5 [shape = 'u8[8192]{0}', space=vmem, size = 0x2000, scoped, tag = 'input window, operand 1, single buffered']
    #allocation6 [shape = 's32[1]{0}', space=sflag, size = 0x4, scoped, tag = 'scoped memory for tpu_custom_call.1']
    #allocation7 [shape = 'u8[16384]{0}', space=vmem, size = 0x4000, scoped, tag = 'input window, operand 2, single buffered']
    #allocation8 [shape = 'u8[16384]{0}', space=vmem, size = 0x4000, scoped, tag = 'input window, operand 3, single buffered']
    #allocation9 [shape = 's32[1]{0}', space=sflag, size = 0x4, scoped, tag = 'scoped memory for tpu_custom_call.1']
    #allocation10 [shape = 'u8[8192]{0}', space=vmem, size = 0x2000, scoped, tag = 'output window, operand 0, single buffered']
    %11 = vsyncpa [#allocation3], 0
    %12 = vsyncpa [#allocation6], 0
    %13 = vsyncpa [#allocation9], 0
    %14 = vsyncpa [#allocation4], 0
    // Predicated region
    $region2: #{tpu_custom_call.1} parent=1 // pred_check
      _
    $region3: #{tpu_custom_call.1} parent=1 // pred_check_branch
      %16 = sbr.rel (0) target = $region5
    $region4: #{tpu_custom_call.1} parent=1 // pred_region
      %18 = vsyncadd [#allocation3], 0
      %s19 = sshll.u32 %s0, 4
      %s20 = int_to_ptr.hbm [resolvable:$true] %s19
      %s21 = sshll.u32 [#allocation2], 4
      %s22 = int_to_ptr.vmem [resolvable:$true] %s21
      %27 = dma.hbm_to_vmem [thread:$0]  %s20, 256, %s22, [#allocation3], 128, 128, 8
    $region5: #{tpu_custom_call.1} parent=1 // pred_fallthru
      _
    // Predicated region
    $region6: #{tpu_custom_call.1} parent=1 // pred_check
      _
    $region7: #{tpu_custom_call.1} parent=1 // pred_check_branch
      %29 = sbr.rel (0) target = $region9
    $region8: #{tpu_custom_call.1} parent=1 // pred_region
      %31 = vsyncadd [#allocation6], 0
      %s32 = sshll.u32 %s1, 4
      %s33 = int_to_ptr.hbm [resolvable:$true] %s32
      %s34 = sshll.u32 [#allocation5], 4
      %s35 = int_to_ptr.vmem [resolvable:$true] %s34
      %40 = dma.hbm_to_vmem [thread:$0]  %s33, 256, %s35, [#allocation6], 128, 128, 8
    $region9: #{tpu_custom_call.1} parent=1 // pred_fallthru
      _
    // Predicated region
    $region10: #{tpu_custom_call.1} parent=1 // pred_check
      _
    $region11: #{tpu_custom_call.1} parent=1 // pred_check_branch
      %42 = sbr.rel (0) target = $region13
    $region12: #{tpu_custom_call.1} parent=1 // pred_region
      %44 = vsyncadd [#allocation6], 0
      %s45 = sshll.u32 %s2, 4
      %s46 = int_to_ptr.hbm [resolvable:$true] %s45
      %s47 = sshll.u32 [#allocation7], 4
      %s48 = int_to_ptr.vmem [resolvable:$true] %s47
      %53 = dma.hbm_to_vmem [thread:$0]  %s46, 512, %s48, [#allocation6], 128, 128, 8
    $region13: #{tpu_custom_call.1} parent=1 // pred_fallthru
      _
    // Predicated region
    $region14: #{tpu_custom_call.1} parent=1 // pred_check
      _
    $region15: #{tpu_custom_call.1} parent=1 // pred_check_branch
      %55 = sbr.rel (0) target = $region17
    $region16: #{tpu_custom_call.1} parent=1 // pred_region
      %57 = vsyncadd [#allocation9], 0
      %s58 = sshll.u32 %s3, 4
      %s59 = int_to_ptr.hbm [resolvable:$true] %s58
      %s60 = sshll.u32 [#allocation8], 4
      %s61 = int_to_ptr.vmem [resolvable:$true] %s60
      %66 = dma.hbm_to_vmem [thread:$0]  %s59, 512, %s61, [#allocation9], 128, 128, 8
    $region17: #{tpu_custom_call.1} parent=1 // pred_fallthru
      _
    // Predicated region
    $region18: #{tpu_custom_call.1} parent=1 // pred_check
      _
    $region19: #{tpu_custom_call.1} parent=1 // pred_check_branch
      %68 = sbr.rel (0) target = $region21
    $region20: #{tpu_custom_call.1} parent=1 // pred_region
      _
    $region21: #{tpu_custom_call.1} parent=1 // pred_fallthru
      _
    // Predicated region
    $region22: #{tpu_custom_call.1} parent=1 // pred_check
      _
    $region23: #{tpu_custom_call.1} parent=1 // pred_check_branch
      %70 = sbr.rel (0) target = $region25
    $region24: #{tpu_custom_call.1} parent=1 // pred_region
      _
    $region25: #{tpu_custom_call.1} parent=1 // pred_fallthru
      _
    // Predicated region
    $region26: #{tpu_custom_call.1} parent=1 // pred_check
      _
    $region27: #{tpu_custom_call.1} parent=1 // pred_check_branch
      %72 = sbr.rel (0) target = $region29
    $region28: #{tpu_custom_call.1} parent=1 // pred_region
      %74 = dma.done [#allocation3], 256
    $region29: #{tpu_custom_call.1} parent=1 // pred_fallthru
      _
    // Predicated region
    $region30: #{tpu_custom_call.1} parent=1 // pred_check
      _
    $region31: #{tpu_custom_call.1} parent=1 // pred_check_branch
      %76 = sbr.rel (0) target = $region33
    $region32: #{tpu_custom_call.1} parent=1 // pred_region
      %78 = dma.done [#allocation6], 256
    $region33: #{tpu_custom_call.1} parent=1 // pred_fallthru
      _
    // Predicated region
    $region34: #{tpu_custom_call.1} parent=1 // pred_check
      _
    $region35: #{tpu_custom_call.1} parent=1 // pred_check_branch
      %80 = sbr.rel (0) target = $region37
    $region36: #{tpu_custom_call.1} parent=1 // pred_region
      %82 = dma.done [#allocation6], 512
    $region37: #{tpu_custom_call.1} parent=1 // pred_fallthru
      _
    // Predicated region
    $region38: #{tpu_custom_call.1} parent=1 // pred_check
      _
    $region39: #{tpu_custom_call.1} parent=1 // pred_check_branch
      %84 = sbr.rel (0) target = $region41
    $region40: #{tpu_custom_call.1} parent=1 // pred_region
      %86 = dma.done [#allocation9], 512
    $region41: #{tpu_custom_call.1} parent=1 // pred_fallthru
      _
    %v87 = vld [vmem:[#allocation2] sm:$0xff]
    %v88 = vld [vmem:[#allocation2 + $0x8] sm:$0xff]
    %v89 = vld [vmem:[#allocation7] sm:$0xff]
    %v90 = vld [vmem:[#allocation7 + $0x8] sm:$0xff]
    %v91 = vld [vmem:[#allocation7 + $0x10] sm:$0xff]
    %v92 = vld [vmem:[#allocation7 + $0x18] sm:$0xff]
    %v93 = vld [vmem:[%s4] sm:$0x1]
    %v95 = vperm.slane %v93, 0
    %vm97 = vcmask 261120
    %v99 = vsel %vm97, %v87, 0
    %v102 = vsel %vm97, %v88, 0
    %104 = vmatpush.msra.mxu0 0.0
    %105 = vmatpush.msra.mxu0 0.0
    %106 = vmatpush.msra.mxu0 0.0
    %107 = vmatpush.msra.mxu0 0.0
    %108 = vmatpush.msra.mxu0 0.0
    %109 = vmatpush.msra.mxu0 0.0
    %110 = vmatpush.msra.mxu0 0.0
    %111 = vmatpush.msra.mxu0 0.0
    %112 = vmatpush.msra.mxu0 0.0
    %113 = vmatpush.msra.mxu0 0.0
    %114 = vmatpush.msra.mxu0 0.0
    %115 = vmatpush.msra.mxu0 0.0
    %116 = vmatpush.msra.mxu0 %v92
    %117 = vmatpush.msra.mxu0 %v91
    %118 = vmatpush.msra.mxu0 %v90
    %119 = vmatpush.msra.mxu0 %v89
    %120 = vmatmul.f32.gmra.mxu0 %v99
    %v121 = vpop.f32.mrf.mxu0
    %v122 = vadd.f32 %v95, %v121
    %123 = vmatmul.f32.gmra.mxu0 %v102
    %v124 = vpop.f32.mrf.mxu0
    %v125 = vadd.f32 %v95, %v124
    %126 = vdwg.mxu0
    %v127 = vld [vmem:[#allocation5] sm:$0xff]
    %v128 = vld [vmem:[#allocation5 + $0x8] sm:$0xff]
    %v129 = vld [vmem:[#allocation8] sm:$0xff]
    %v130 = vld [vmem:[#allocation8 + $0x8] sm:$0xff]
    %v131 = vld [vmem:[#allocation8 + $0x10] sm:$0xff]
    %v132 = vld [vmem:[#allocation8 + $0x18] sm:$0xff]
    %v133 = vld [vmem:[%s5] sm:$0x1]
    %v135 = vperm.slane %v133, 0
    %v138 = vsel %vm97, %v127, 0
    %v141 = vsel %vm97, %v128, 0
    %143 = vmatpush.msra.mxu0 0.0
    %144 = vmatpush.msra.mxu0 0.0
    %145 = vmatpush.msra.mxu0 0.0
    %146 = vmatpush.msra.mxu0 0.0
    %147 = vmatpush.msra.mxu0 0.0
    %148 = vmatpush.msra.mxu0 0.0
    %149 = vmatpush.msra.mxu0 0.0
    %150 = vmatpush.msra.mxu0 0.0
    %151 = vmatpush.msra.mxu0 0.0
    %152 = vmatpush.msra.mxu0 0.0
    %153 = vmatpush.msra.mxu0 0.0
    %154 = vmatpush.msra.mxu0 0.0
    %155 = vmatpush.msra.mxu0 %v132
    %156 = vmatpush.msra.mxu0 %v131
    %157 = vmatpush.msra.mxu0 %v130
    %158 = vmatpush.msra.mxu0 %v129
    %159 = vmatmul.f32.gmra.mxu0 %v138
    %v160 = vpop.f32.mrf.mxu0
    %v161 = vadd.f32 %v135, %v160
    %162 = vmatmul.f32.gmra.mxu0 %v141
    %v163 = vpop.f32.mrf.mxu0
    %v164 = vadd.f32 %v135, %v163
    %165 = vdwg.mxu0
    %168 = vrot.lane.b32.xlu0 %v161, 64
    %v169 = vpop.permute.xlu0 %168
    %170 = vrot.lane.b32.xlu0 %v164, 64
    %v171 = vpop.permute.xlu0 %170
    %vm174 = vcmask 523264
    %v175 = vsel %vm174, %v122, %v169
    %v176 = vsel %vm174, %v125, %v171
    %177 = vst [vmem:[#allocation10] sm:$0xff] %v175
    %178 = vst [vmem:[#allocation10 + $0x8] sm:$0xff] %v176
    // Predicated region
    $region42: #{tpu_custom_call.1} parent=1 // pred_check
      _
    $region43: #{tpu_custom_call.1} parent=1 // pred_check_branch
      %180 = sbr.rel (0) target = $region45
    $region44: #{tpu_custom_call.1} parent=1 // pred_region
      %182 = vsyncadd [#allocation4], 0
      %s183 = sshll.u32 [#allocation10], 4
      %s184 = int_to_ptr.vmem [resolvable:$true] %s183
      %s185 = sshll.u32 %s6, 4
      %s186 = int_to_ptr.hbm [resolvable:$true] %s185
      %191 = dma.vmem_to_hbm [thread:$0]  %s184, 256, %s186, [#allocation4], 128, 128, 8
    $region45: #{tpu_custom_call.1} parent=1 // pred_fallthru
      _
    // Predicated region
    $region46: #{tpu_custom_call.1} parent=1 // pred_check
      _
    $region47: #{tpu_custom_call.1} parent=1 // pred_check_branch
      %193 = sbr.rel (0) target = $region49
    $region48: #{tpu_custom_call.1} parent=1 // pred_region
      %195 = dma.done [#allocation4], 256
    $region49: #{tpu_custom_call.1} parent=1 // pred_fallthru
      _
    %196 = vsyncpa [#allocation3], 1
    %197 = vsyncpa [#allocation6], 1
    %198 = vsyncpa [#allocation9], 1
    %199 = vsyncpa [#allocation4], 1

</llo_original>
